<compile_context>
chip_gen: v7x
topology: tpu7x:2x2x1
jax: 0.10.0
libtpu: 0.0.40
codegen_flags: <defaults>
</compile_context>

<pallas_src>
import functools

import jax
import jax.numpy as jnp
from jax.experimental import pallas as pl
from jax.experimental.pallas import tpu as pltpu


# ----------------------------------------------------------------------------
# Fused kernel: one grid step per batch row.
# ----------------------------------------------------------------------------
def _textcnn_fused_kernel(xcol_ref, wconv_ref, bconv_ref, mask_ref,
                          wfc_ref, bfc_ref, o_ref):
    # xcol_ref : (S, K)       im2col rows for this batch element (K = C*fs_max*E)
    # wconv_ref: (K, Ftot)    packed conv weights (all filter sizes)
    # bconv_ref: (1, Ftot)    packed conv biases
    # mask_ref : (S, Ftot)    0 where position valid for that filter size, -1e30 else
    # wfc_ref  : (Ftot, L)    fc weight (pre-transposed)
    # bfc_ref  : (1, L)       fc bias
    # o_ref    : (1, 1, L)    log-probs for this batch element
    acc = jnp.dot(xcol_ref[...], wconv_ref[...],
                  preferred_element_type=jnp.float32)            # (S, Ftot)
    acc = jnp.maximum(acc + bconv_ref[...], 0.0) + mask_ref[...]  # bias+ReLU+mask
    pooled = jnp.max(acc, axis=0, keepdims=True)                 # (1, Ftot)

    logits = jnp.dot(pooled, wfc_ref[...],
                     preferred_element_type=jnp.float32) + bfc_ref[...]
    m = jnp.max(logits, axis=-1, keepdims=True)
    z = logits - m
    lse = jnp.log(jnp.sum(jnp.exp(z), axis=-1, keepdims=True))
    o_ref[0] = z - lse                                           # LogSoftmax(dim=-1)


def textcnn_fused(xcol, wconv, bconv, mask, wfc, bfc, *, batch, seq_len):
    bt, k = xcol.shape
    ftot = wconv.shape[1]
    lbl = wfc.shape[1]
    assert bt == batch * seq_len
    out = pl.pallas_call(
        _textcnn_fused_kernel,
        out_shape=jax.ShapeDtypeStruct((batch, 1, lbl), jnp.float32),
        grid=(batch,),
        in_specs=[
            pl.BlockSpec((seq_len, k), lambda b: (b, 0)),     # this batch row's slab
            pl.BlockSpec((k, ftot), lambda b: (0, 0)),
            pl.BlockSpec((1, ftot), lambda b: (0, 0)),
            pl.BlockSpec((seq_len, ftot), lambda b: (0, 0)),
            pl.BlockSpec((ftot, lbl), lambda b: (0, 0)),
            pl.BlockSpec((1, lbl), lambda b: (0, 0)),
        ],
        out_specs=pl.BlockSpec((1, 1, lbl), lambda b: (b, 0, 0)),
        compiler_params=pltpu.CompilerParams(
            dimension_semantics=("parallel",)),
    )(xcol, wconv, bconv, mask, wfc, bfc)
    return out.reshape(batch, lbl)


# ----------------------------------------------------------------------------
# One-time parameter packing (layout plumbing done offline, not per call).
# ----------------------------------------------------------------------------
def prepare_params(raw, filter_sizes, num_filter, seq_len_max):
    embed1, embed2 = raw["embed1"], raw["embed2"]
    e = embed1.shape[1]
    c = 2                                   # multi-channel
    fs_max = max(filter_sizes)
    ftot = len(filter_sizes) * num_filter

    wconv = jnp.zeros((c, fs_max, e, ftot), jnp.float32)
    bconv = []
    for s, (w, b) in enumerate(raw["convs"]):        # w: (F, C, fs, E)
        fs = w.shape[2]
        w_t = jnp.transpose(w, (1, 2, 3, 0))         # (C, fs, E, F)
        wconv = wconv.at[:, :fs, :, s * num_filter:(s + 1) * num_filter].set(w_t)
        bconv.append(b)
    wconv = wconv.reshape(c * fs_max * e, ftot)      # (K, Ftot), K = C*fs_max*E
    bconv = jnp.concatenate(bconv).reshape(1, ftot)

    # Additive mask: conv output position t is valid for filter size fs iff
    # t <= S - fs ("valid" convolution extent).  Invalid -> -1e30.
    limit = jnp.repeat(jnp.array([seq_len_max - fs for fs in filter_sizes],
                                 dtype=jnp.int32), num_filter)         # (Ftot,)
    t_idx = jnp.arange(seq_len_max, dtype=jnp.int32)[:, None]          # (S, 1)
    mask = jnp.where(t_idx <= limit[None, :], 0.0, -1e30).astype(jnp.float32)

    return {
        "embed1": embed1, "embed2": embed2, "fs_max": fs_max,
        "wconv": wconv, "bconv": bconv, "mask": mask,
        "wfc": raw["fc_w"].T, "bfc": raw["fc_b"].reshape(1, -1),
    }


# ----------------------------------------------------------------------------
# Forward pass (glue in plain JAX: embedding/im2col gather, dropout=identity).
# ----------------------------------------------------------------------------
def textcnn_forward(prepped, input_ids, seq_len=None, label_ids=None):
    del seq_len  # parity with PyTorch model: max-pool is not masked by length
    b, s = input_ids.shape
    fs_max = prepped["fs_max"]

    # Shifted-index im2col gather.  Positions beyond the sequence are clamped;
    # they only ever multiply zero-padded weight taps or get masked out of the
    # max-pool, so their value is irrelevant.
    pos = jnp.minimum(jnp.arange(s)[:, None] + jnp.arange(fs_max)[None, :],
                      s - 1)                                   # (S, fs_max)
    ids_shift = input_ids[:, pos]                              # (B, S, fs_max)
    reps1 = prepped["embed1"][ids_shift].reshape(b, s, -1)     # (B, S, fs_max*E)
    reps2 = prepped["embed2"][ids_shift].reshape(b, s, -1)
    xcol = jnp.concatenate([reps1, reps2], axis=-1).reshape(b * s, -1)  # (B*S, K)

    probs = textcnn_fused(xcol, prepped["wconv"], prepped["bconv"],
                          prepped["mask"], prepped["wfc"], prepped["bfc"],
                          batch=b, seq_len=s)
    if label_ids is None:
        return None, probs
    # CrossEntropyLoss(logits, labels) == NLL of log_softmax (plain-JAX glue).
    loss = -jnp.mean(jnp.take_along_axis(probs, label_ids[:, None], axis=1))
    return loss, probs


# ----------------------------------------------------------------------------
# Pure-JAX reference (mirrors the PyTorch module) for a correctness check.
# ----------------------------------------------------------------------------
def _reference_forward(raw, input_ids):
    hi = jax.lax.Precision.HIGHEST
    reps1 = raw["embed1"][input_ids]
    reps2 = raw["embed2"][input_ids]
    x = jnp.stack([reps1, reps2], axis=1)                      # (B, C, S, E)
    pooled = []
    for (w, bcv) in raw["convs"]:                              # w: (F, C, fs, E)
        _, c, fs, _ = w.shape
        t = x.shape[2] - fs + 1
        out = jnp.zeros((x.shape[0], t, w.shape[0]), jnp.float32)
        for ci in range(c):
            for dt in range(fs):
                out = out + jnp.einsum("bte,fe->btf", x[:, ci, dt:dt + t, :],
                                       w[:, ci, dt, :], precision=hi)
        out = jnp.maximum(out + bcv[None, None, :], 0.0)
        pooled.append(jnp.max(out, axis=1))
    hidden = jnp.concatenate(pooled, axis=1)
    logits = jnp.dot(hidden, raw["fc_w"].T, precision=hi) + raw["fc_b"]
    return jax.nn.log_softmax(logits, axis=-1)


if __name__ == "__main__":
    # Small, TPU-friendly, deterministic config.
    vocab_size, embed_dim, pad_idx = 50, 32, 0
    num_filter, filter_sizes, num_labels = 8, (3, 4, 5), 4
    B, S = 2, 16

    key = jax.random.PRNGKey(0)
    keys = jax.random.split(key, 10)
    embed1 = 0.1 * jax.random.normal(keys[0], (vocab_size, embed_dim), jnp.float32)
    embed1 = embed1.at[pad_idx].set(0.0)                       # padding_idx row = 0
    embed2 = 0.1 * jax.random.normal(keys[1], (vocab_size, embed_dim), jnp.float32)
    embed2 = embed2.at[pad_idx].set(0.0)

    convs = []
    for i, fs in enumerate(filter_sizes):
        w = 0.1 * jax.random.normal(keys[2 + i],
                                    (num_filter, 2, fs, embed_dim), jnp.float32)
        bcv = 0.01 * jax.random.normal(keys[5 + i], (num_filter,), jnp.float32)
        convs.append((w, bcv))

    fc_w = 0.1 * jax.random.normal(
        keys[8], (num_labels, len(filter_sizes) * num_filter), jnp.float32)
    fc_b = 0.01 * jax.random.normal(keys[9], (num_labels,), jnp.float32)

    raw_params = {"embed1": embed1, "embed2": embed2, "convs": convs,
                  "fc_w": fc_w, "fc_b": fc_b}
    prepped = prepare_params(raw_params, filter_sizes, num_filter, S)

    input_ids = jax.random.randint(jax.random.PRNGKey(1), (B, S), 0, vocab_size,
                                   dtype=jnp.int32)
    seq_len = jnp.full((B,), S, dtype=jnp.int32)               # kept for API parity

    fwd = jax.jit(lambda ids, sl: textcnn_forward(prepped, ids, sl))
    loss, probs = fwd(input_ids, seq_len)
    probs = jax.block_until_ready(probs)

    assert loss is None
    assert probs.shape == (B, num_labels)
    # log-softmax rows must (exp-)sum to 1
    assert jnp.allclose(jnp.sum(jnp.exp(probs), axis=-1), 1.0, atol=1e-5)
    # match the un-fused pure-JAX reference
    ref = _reference_forward(raw_params, input_ids)
    assert jnp.allclose(probs, ref, atol=5e-3, rtol=5e-3)
    print("KERNEL_OK")
</pallas_src>

<mosaic_0001>
module attributes {stable_mosaic.version = 11 : i64} {
  func.func @_textcnn_fused_kernel(%arg0: i32, %arg1: memref<16x320xf32, #tpu.memory_space<vmem>>, %arg2: memref<320x24xf32, #tpu.memory_space<vmem>>, %arg3: memref<1x24xf32, #tpu.memory_space<vmem>>, %arg4: memref<16x24xf32, #tpu.memory_space<vmem>>, %arg5: memref<24x4xf32, #tpu.memory_space<vmem>>, %arg6: memref<1x4xf32, #tpu.memory_space<vmem>>, %arg7: memref<1x1x4xf32, #tpu.memory_space<vmem>>) attributes {dimension_semantics = [#tpu.dimension_semantics<parallel>], iteration_bounds = array<i64: 2>, scalar_prefetch = 0 : i64, scratch_operands = 0 : i64, tpu.core_type = #tpu.core_type<tc>, window_params = [{transform_indices = @transform_0, window_bounds = array<i64: 16, 320>}, {pipeline_mode = #tpu.pipeline_mode<synchronous>, transform_indices = @transform_1, window_bounds = array<i64: 320, 24>}, {pipeline_mode = #tpu.pipeline_mode<synchronous>, transform_indices = @transform_2, window_bounds = array<i64: 1, 24>}, {pipeline_mode = #tpu.pipeline_mode<synchronous>, transform_indices = @transform_3, window_bounds = array<i64: 16, 24>}, {pipeline_mode = #tpu.pipeline_mode<synchronous>, transform_indices = @transform_4, window_bounds = array<i64: 24, 4>}, {pipeline_mode = #tpu.pipeline_mode<synchronous>, transform_indices = @transform_5, window_bounds = array<i64: 1, 4>}, {transform_indices = @transform_6, window_bounds = array<i64: 1, 1, 4>}]} {
    %c0 = arith.constant 0 : index
    %c0_0 = arith.constant 0 : index
    %0 = vector.load %arg1[%c0, %c0_0] : memref<16x320xf32, #tpu.memory_space<vmem>>, vector<16x320xf32>
    %c0_1 = arith.constant 0 : index
    %c0_2 = arith.constant 0 : index
    %1 = vector.load %arg2[%c0_1, %c0_2] : memref<320x24xf32, #tpu.memory_space<vmem>>, vector<320x24xf32>
    %cst = arith.constant dense<0.000000e+00> : vector<16x24xf32>
    %2 = tpu.matmul %0, %1, %cst {dimension_numbers = #tpu.dot_dimension_numbers<[1], [0], [0], [1], [0, 0, 1, 1], [], []>} : vector<16x320xf32>, vector<320x24xf32>, vector<16x24xf32> -> vector<16x24xf32>
    %c0_3 = arith.constant 0 : index
    %c0_4 = arith.constant 0 : index
    %3 = vector.load %arg3[%c0_3, %c0_4] : memref<1x24xf32, #tpu.memory_space<vmem>>, vector<1x24xf32>
    %4 = vector.broadcast %3 : vector<1x24xf32> to vector<16x24xf32>
    %5 = arith.addf %2, %4 : vector<16x24xf32>
    %cst_5 = arith.constant 0.000000e+00 : f32
    %6 = vector.broadcast %cst_5 : f32 to vector<16x24xf32>
    %7 = arith.maximumf %5, %6 : vector<16x24xf32>
    %c0_6 = arith.constant 0 : index
    %c0_7 = arith.constant 0 : index
    %8 = vector.load %arg4[%c0_6, %c0_7] : memref<16x24xf32, #tpu.memory_space<vmem>>, vector<16x24xf32>
    %9 = arith.addf %7, %8 : vector<16x24xf32>
    %cst_8 = arith.constant dense<0xFF800000> : vector<24xf32>
    %10 = vector.multi_reduction <maximumf>, %9, %cst_8 [0] : vector<16x24xf32> to vector<24xf32>
    %11 = vector.shape_cast %10 : vector<24xf32> to vector<1x24xf32>
    %c0_9 = arith.constant 0 : index
    %c0_10 = arith.constant 0 : index
    %12 = vector.load %arg5[%c0_9, %c0_10] : memref<24x4xf32, #tpu.memory_space<vmem>>, vector<24x4xf32>
    %cst_11 = arith.constant dense<0.000000e+00> : vector<1x4xf32>
    %13 = tpu.matmul %11, %12, %cst_11 {dimension_numbers = #tpu.dot_dimension_numbers<[1], [0], [0], [1], [0, 0, 1, 1], [], []>} : vector<1x24xf32>, vector<24x4xf32>, vector<1x4xf32> -> vector<1x4xf32>
    %c0_12 = arith.constant 0 : index
    %c0_13 = arith.constant 0 : index
    %14 = vector.load %arg6[%c0_12, %c0_13] : memref<1x4xf32, #tpu.memory_space<vmem>>, vector<1x4xf32>
    %15 = arith.addf %13, %14 : vector<1x4xf32>
    %cst_14 = arith.constant dense<0xFF800000> : vector<1xf32>
    %16 = vector.multi_reduction <maximumf>, %15, %cst_14 [1] : vector<1x4xf32> to vector<1xf32>
    %17 = vector.shape_cast %16 : vector<1xf32> to vector<1x1xf32>
    %18 = vector.broadcast %17 : vector<1x1xf32> to vector<1x4xf32>
    %19 = arith.subf %15, %18 : vector<1x4xf32>
    %20 = math.exp %19 : vector<1x4xf32>
    %cst_15 = arith.constant dense<0.000000e+00> : vector<1xf32>
    %21 = vector.multi_reduction <add>, %20, %cst_15 [1] : vector<1x4xf32> to vector<1xf32>
    %22 = vector.shape_cast %21 : vector<1xf32> to vector<1x1xf32>
    %23 = math.log %22 : vector<1x1xf32>
    %24 = vector.broadcast %23 : vector<1x1xf32> to vector<1x4xf32>
    %25 = arith.subf %19, %24 : vector<1x4xf32>
    %c0_16 = arith.constant 0 : index
    %c0_17 = arith.constant 0 : index
    %c0_18 = arith.constant 0 : index
    %26 = vector.load %arg7[%c0_16, %c0_17, %c0_18] : memref<1x1x4xf32, #tpu.memory_space<vmem>>, vector<1x1x4xf32>
    %27 = vector.shape_cast %26 : vector<1x1x4xf32> to vector<1x4xf32>
    %28 = vector.shape_cast %25 : vector<1x4xf32> to vector<1x1x4xf32>
    tpu.vector_store %arg7[%c0_16, %c0_17, %c0_18], %28 {strides = array<i32>} : memref<1x1x4xf32, #tpu.memory_space<vmem>>, vector<1x1x4xf32>,
    return
  }
  func.func @transform_0(%arg0: i32) -> (i32, i32) {
    %c0_i32 = arith.constant 0 : i32
    %c0_i32_0 = arith.constant 0 : i32
    return %arg0, %c0_i32 : i32, i32
  }
  func.func @transform_1(%arg0: i32) -> (i32, i32) {
    %c0_i32 = arith.constant 0 : i32
    %c0_i32_0 = arith.constant 0 : i32
    %c0_i32_1 = arith.constant 0 : i32
    return %c0_i32, %c0_i32_0 : i32, i32
  }
  func.func @transform_2(%arg0: i32) -> (i32, i32) {
    %c0_i32 = arith.constant 0 : i32
    %c0_i32_0 = arith.constant 0 : i32
    %c0_i32_1 = arith.constant 0 : i32
    return %c0_i32, %c0_i32_0 : i32, i32
  }
  func.func @transform_3(%arg0: i32) -> (i32, i32) {
    %c0_i32 = arith.constant 0 : i32
    %c0_i32_0 = arith.constant 0 : i32
    %c0_i32_1 = arith.constant 0 : i32
    return %c0_i32, %c0_i32_0 : i32, i32
  }
  func.func @transform_4(%arg0: i32) -> (i32, i32) {
    %c0_i32 = arith.constant 0 : i32
    %c0_i32_0 = arith.constant 0 : i32
    %c0_i32_1 = arith.constant 0 : i32
    return %c0_i32, %c0_i32_0 : i32, i32
  }
  func.func @transform_5(%arg0: i32) -> (i32, i32) {
    %c0_i32 = arith.constant 0 : i32
    %c0_i32_0 = arith.constant 0 : i32
    %c0_i32_1 = arith.constant 0 : i32
    return %c0_i32, %c0_i32_0 : i32, i32
  }
  func.func @transform_6(%arg0: i32) -> (i32, i32, i32) {
    %c0_i32 = arith.constant 0 : i32
    %c0_i32_0 = arith.constant 0 : i32
    %c0_i32_1 = arith.constant 0 : i32
    return %arg0, %c0_i32, %c0_i32_0 : i32, i32, i32
  }
}

</mosaic_0001>

<llo_original>
// kernel: _lambda_.1
$region0: #{_lambda_.1}
  #allocation0 [shape = 'u32[]', space=smem, size = 0x4, offset = 0x4, fixed_abs, tag = 'smem constant byte address 0x4 - core index']
  #allocation1 [shape = 'u32[144,128]{1,0:T(1,128)}', space=vmem, size = 0x12000, scoped, tag = 'internal scratch']
  %s0 = inlined_call_operand.vmem [shape: f32[32,320], index: 0, kind: input, shape index: {}]
  %s1 = inlined_call_operand.vmem [shape: f32[320,24], index: 1, kind: input, shape index: {}]
  %s2 = inlined_call_operand.vmem [shape: f32[1,24], index: 2, kind: input, shape index: {}]
  %s3 = inlined_call_operand.vmem [shape: f32[16,24], index: 3, kind: input, shape index: {}]
  %s4 = inlined_call_operand.vmem [shape: f32[24,4], index: 4, kind: input, shape index: {}]
  %s5 = inlined_call_operand.vmem [shape: f32[1,4], index: 5, kind: input, shape index: {}]
  %s6 = inlined_call_operand.hbm [shape: f32[2,1,4], index: 6, kind: output, shape index: {}]
  %s7 = sld [smem:[#allocation0]]
  $region57: #{_lambda_.1} parent=0
    _
  %s9 = ssub.s32 1, %s7
  %s10 = scalar_select 0, %s9, %s7
  $region1: #{_lambda_.1} parent=0
    #allocation2 [shape = 'u8[1024]{0}', space=vmem, size = 0x400, scoped, tag = 'output window, operand 0']
    #allocation3 [shape = 's32[2]{0}', space=sflag, size = 0x8, scoped, tag = 'scoped memory for _lambda_.1']
    %11 = vsyncpa [#allocation3], 0
    %s12 = scalar_lea.sflag [#allocation3], 1
    %13 = vsyncpa %s12, 0
    loop: start=0, step=1, limit=4
    $region2: #{_lambda_.1} parent=1 // loop_pre_header
      _
    $region3: #{_lambda_.1} parent=1 // loop_header
      %s15 = sphi 0, %s19
      %p16 = scmp.ge.s32.totalorder %s15, 4
      %s25 = sphi 0, %s27
      %s28 = sphi 0, %s25
      %s29 = sphi 0, %s28
      %s45 = sphi 0, %s29
      %s49 = sphi 0, %s49
      %s51 = sphi 0, %s49
      %s52 = sphi 0, %s51
      %s66 = sphi 0, %s52
      %s70 = sphi 0, %s70
      %s72 = sphi 0, %s70
      %s73 = sphi 0, %s72
      %s87 = sphi 0, %s73
      %s91 = sphi 0, %s91
      %s93 = sphi 0, %s91
      %s94 = sphi 0, %s93
      %s108 = sphi 0, %s94
      %s112 = sphi 0, %s112
      %s114 = sphi 0, %s112
      %s115 = sphi 0, %s114
      %s129 = sphi 0, %s115
      %s133 = sphi 0, %s133
      %s135 = sphi 0, %s133
      %s136 = sphi 0, %s135
      %s150 = sphi 0, %s136
      %s156 = sphi 0, %s158
      %s159 = sphi 0, %s156
      %s160 = sphi 0, %s159
      %s176 = sphi 0, %s160
    $region4: #{_lambda_.1} parent=1 // loop_header_branch
      %18 = sbr.rel (%p16) target = $region8
    $region5: #{_lambda_.1} parent=1 // loop_body
      %s20 = ssub.s32 %s15, 1
      %s21 = ssub.s32 %s15, 2
      %s22 = sadd.s32 %s15, 1
      %s23 = ssub.s32 %s15, %s22
      %p24 = scmp.eq.s32.totalorder %s23, 0
      %s26 = sadd.s32 %s25, 1
      %s27 = scalar_select %p24, %s25, %s26
      %p30 = pneg %p24
      %p31 = scmp.eq.s32.totalorder %s15, 1
      %p32 = por %p30, %p31
      %p33 = scmp.ne.s32.totalorder %s25, %s28
      %p34 = scmp.eq.s32.totalorder %s15, 0
      %p35 = por %p33, %p34
      %p36 = scmp.ne.s32.totalorder %s25, %s28
      %p37 = scmp.eq.s32.totalorder %s20, 1
      %p38 = por %p36, %p37
      %p39 = scmp.ne.s32.totalorder %s28, %s29
      %p40 = scmp.eq.s32.totalorder %s20, 0
      %p41 = por %p39, %p40
      %p42 = scmp.ne.s32.totalorder %s28, %s29
      %p43 = scmp.eq.s32.totalorder %s21, 1
      %p44 = por %p42, %p43
      %p46 = scmp.ne.s32.totalorder %s29, %s45
      %p47 = scmp.eq.s32.totalorder %s21, 0
      %p48 = por %p46, %p47
      %s50 = sadd.s32 %s49, 1
      %p53 = scmp.eq.s32.totalorder %s15, 1
      %p54 = scmp.ne.s32.totalorder %s49, %s51
      %p55 = scmp.eq.s32.totalorder %s15, 0
      %p56 = por %p54, %p55
      %p57 = scmp.ne.s32.totalorder %s49, %s51
      %p58 = scmp.eq.s32.totalorder %s20, 1
      %p59 = por %p57, %p58
      %p60 = scmp.ne.s32.totalorder %s51, %s52
      %p61 = scmp.eq.s32.totalorder %s20, 0
      %p62 = por %p60, %p61
      %p63 = scmp.ne.s32.totalorder %s51, %s52
      %p64 = scmp.eq.s32.totalorder %s21, 1
      %p65 = por %p63, %p64
      %p67 = scmp.ne.s32.totalorder %s52, %s66
      %p68 = scmp.eq.s32.totalorder %s21, 0
      %p69 = por %p67, %p68
      %s71 = sadd.s32 %s70, 1
      %p74 = scmp.eq.s32.totalorder %s15, 1
      %p75 = scmp.ne.s32.totalorder %s70, %s72
      %p76 = scmp.eq.s32.totalorder %s15, 0
      %p77 = por %p75, %p76
      %p78 = scmp.ne.s32.totalorder %s70, %s72
      %p79 = scmp.eq.s32.totalorder %s20, 1
      %p80 = por %p78, %p79
      %p81 = scmp.ne.s32.totalorder %s72, %s73
      %p82 = scmp.eq.s32.totalorder %s20, 0
      %p83 = por %p81, %p82
      %p84 = scmp.ne.s32.totalorder %s72, %s73
      %p85 = scmp.eq.s32.totalorder %s21, 1
      %p86 = por %p84, %p85
      %p88 = scmp.ne.s32.totalorder %s73, %s87
      %p89 = scmp.eq.s32.totalorder %s21, 0
      %p90 = por %p88, %p89
      %s92 = sadd.s32 %s91, 1
      %p95 = scmp.eq.s32.totalorder %s15, 1
      %p96 = scmp.ne.s32.totalorder %s91, %s93
      %p97 = scmp.eq.s32.totalorder %s15, 0
      %p98 = por %p96, %p97
      %p99 = scmp.ne.s32.totalorder %s91, %s93
      %p100 = scmp.eq.s32.totalorder %s20, 1
      %p101 = por %p99, %p100
      %p102 = scmp.ne.s32.totalorder %s93, %s94
      %p103 = scmp.eq.s32.totalorder %s20, 0
      %p104 = por %p102, %p103
      %p105 = scmp.ne.s32.totalorder %s93, %s94
      %p106 = scmp.eq.s32.totalorder %s21, 1
      %p107 = por %p105, %p106
      %p109 = scmp.ne.s32.totalorder %s94, %s108
      %p110 = scmp.eq.s32.totalorder %s21, 0
      %p111 = por %p109, %p110
      %s113 = sadd.s32 %s112, 1
      %p116 = scmp.eq.s32.totalorder %s15, 1
      %p117 = scmp.ne.s32.totalorder %s112, %s114
      %p118 = scmp.eq.s32.totalorder %s15, 0
      %p119 = por %p117, %p118
      %p120 = scmp.ne.s32.totalorder %s112, %s114
      %p121 = scmp.eq.s32.totalorder %s20, 1
      %p122 = por %p120, %p121
      %p123 = scmp.ne.s32.totalorder %s114, %s115
      %p124 = scmp.eq.s32.totalorder %s20, 0
      %p125 = por %p123, %p124
      %p126 = scmp.ne.s32.totalorder %s114, %s115
      %p127 = scmp.eq.s32.totalorder %s21, 1
      %p128 = por %p126, %p127
      %p130 = scmp.ne.s32.totalorder %s115, %s129
      %p131 = scmp.eq.s32.totalorder %s21, 0
      %p132 = por %p130, %p131
      %s134 = sadd.s32 %s133, 1
      %p137 = scmp.eq.s32.totalorder %s15, 1
      %p138 = scmp.ne.s32.totalorder %s133, %s135
      %p139 = scmp.eq.s32.totalorder %s15, 0
      %p140 = por %p138, %p139
      %p141 = scmp.ne.s32.totalorder %s133, %s135
      %p142 = scmp.eq.s32.totalorder %s20, 1
      %p143 = por %p141, %p142
      %p144 = scmp.ne.s32.totalorder %s135, %s136
      %p145 = scmp.eq.s32.totalorder %s20, 0
      %p146 = por %p144, %p145
      %p147 = scmp.ne.s32.totalorder %s135, %s136
      %p148 = scmp.eq.s32.totalorder %s21, 1
      %p149 = por %p147, %p148
      %p151 = scmp.ne.s32.totalorder %s136, %s150
      %p152 = scmp.eq.s32.totalorder %s21, 0
      %p153 = por %p151, %p152
      %s154 = ssub.s32 %s15, %s22
      %p155 = scmp.eq.s32.totalorder %s154, 0
      %s157 = sadd.s32 %s156, 1
      %s158 = scalar_select %p155, %s156, %s157
      %p161 = pneg %p155
      %p162 = scmp.eq.s32.totalorder %s15, 1
      %p163 = por %p161, %p162
      %p164 = scmp.ne.s32.totalorder %s156, %s159
      %p165 = scmp.eq.s32.totalorder %s15, 0
      %p166 = por %p164, %p165
      %p167 = scmp.ne.s32.totalorder %s156, %s159
      %p168 = scmp.eq.s32.totalorder %s20, 1
      %p169 = por %p167, %p168
      %p170 = scmp.ne.s32.totalorder %s159, %s160
      %p171 = scmp.eq.s32.totalorder %s20, 0
      %p172 = por %p170, %p171
      %p173 = scmp.ne.s32.totalorder %s159, %s160
      %p174 = scmp.eq.s32.totalorder %s21, 1
      %p175 = por %p173, %p174
      %p177 = scmp.ne.s32.totalorder %s160, %s176
      %p178 = scmp.eq.s32.totalorder %s21, 0
      %p179 = por %p177, %p178
      %p180 = scmp.le.s32.totalorder 1, %s15
      %p181 = scmp.lt.s32.totalorder %s15, 3
      %p182 = pnand %p180, %p181
      %p183 = pneg %p182
      // Predicated region
      $region9: #{_lambda_.1} parent=5 // pred_check
        _
      $region10: #{_lambda_.1} parent=5 // pred_check_branch
        %185 = sbr.rel (%p182) target = $region12
      $region11: #{_lambda_.1} parent=5 // pred_region
        %s186 = ssub.s32 %s15, 1
        // Predicated region
        $region13: #{_lambda_.1} parent=11 // pred_check
          %p187 = pneg %p62
        $region14: #{_lambda_.1} parent=11 // pred_check_branch
          %189 = sbr.rel (%p187) target = $region16
        $region15: #{_lambda_.1} parent=11 // pred_region
          _
        $region16: #{_lambda_.1} parent=11 // pred_fallthru
          _
        // Predicated region
        $region17: #{_lambda_.1} parent=11 // pred_check
          %p190 = pneg %p83
        $region18: #{_lambda_.1} parent=11 // pred_check_branch
          %192 = sbr.rel (%p190) target = $region20
        $region19: #{_lambda_.1} parent=11 // pred_region
          _
        $region20: #{_lambda_.1} parent=11 // pred_fallthru
          _
        // Predicated region
        $region21: #{_lambda_.1} parent=11 // pred_check
          %p193 = pneg %p104
        $region22: #{_lambda_.1} parent=11 // pred_check_branch
          %195 = sbr.rel (%p193) target = $region24
        $region23: #{_lambda_.1} parent=11 // pred_region
          _
        $region24: #{_lambda_.1} parent=11 // pred_fallthru
          _
        // Predicated region
        $region25: #{_lambda_.1} parent=11 // pred_check
          %p196 = pneg %p125
        $region26: #{_lambda_.1} parent=11 // pred_check_branch
          %198 = sbr.rel (%p196) target = $region28
        $region27: #{_lambda_.1} parent=11 // pred_region
          _
        $region28: #{_lambda_.1} parent=11 // pred_fallthru
          _
        // Predicated region
        $region29: #{_lambda_.1} parent=11 // pred_check
          %p199 = pneg %p146
        $region30: #{_lambda_.1} parent=11 // pred_check_branch
          %201 = sbr.rel (%p199) target = $region32
        $region31: #{_lambda_.1} parent=11 // pred_region
          _
        $region32: #{_lambda_.1} parent=11 // pred_fallthru
          _
      $region12: #{_lambda_.1} parent=5 // pred_fallthru
        _
      %p202 = scmp.lt.s32.totalorder %s15, 2
      // Predicated region
      $region33: #{_lambda_.1} parent=5 // pred_check
        %p203 = pneg %p202
      $region34: #{_lambda_.1} parent=5 // pred_check_branch
        %205 = sbr.rel (%p203) target = $region36
      $region35: #{_lambda_.1} parent=5 // pred_region
        // Predicated region
        $region37: #{_lambda_.1} parent=35 // pred_check
          %p206 = pneg %p35
        $region38: #{_lambda_.1} parent=35 // pred_check_branch
          %208 = sbr.rel (%p206) target = $region40
        $region39: #{_lambda_.1} parent=35 // pred_region
          %s209 = smul.u32 2, %s15
          %p210 = scmp.lt.s32.totalorder %s209, 3
          %s211 = scalar_select %p210, %s209, 3
          %s212 = smul.addr %s211, 3
          %s213 = smul.addr %s212, 8
          %s214 = scalar_lea.vmem %s0, %s213
          %s215 = smul.u32 2, %s15
        $region40: #{_lambda_.1} parent=35 // pred_fallthru
          _
      $region36: #{_lambda_.1} parent=5 // pred_fallthru
        _
      %p216 = scmp.le.s32.totalorder 1, %s15
      %p217 = scmp.lt.s32.totalorder %s15, 3
      %p218 = pnand %p216, %p217
      %p219 = pneg %p218
      // Predicated region
      $region41: #{_lambda_.1} parent=5 // pred_check
        _
      $region42: #{_lambda_.1} parent=5 // pred_check_branch
        %221 = sbr.rel (%p218) target = $region44
      $region43: #{_lambda_.1} parent=5 // pred_region
        %s222 = ssub.s32 %s15, 1
        %s223 = smul.u32 2, %s20
        %p224 = scmp.lt.s32.totalorder %s223, 3
        %s225 = scalar_select %p224, %s223, 3
        %s226 = smul.addr %s225, 3
        %s227 = smul.addr %s226, 8
        %s228 = scalar_lea.vmem %s0, %s227
        %p229 = pneg %p41
        %p230 = pneg %p38
        %p231 = pneg %p62
        %p232 = pneg %p59
        %p233 = pneg %p83
        %p234 = pneg %p80
        %p235 = pneg %p104
        %p236 = pneg %p101
        %p237 = pneg %p125
        %p238 = pneg %p122
        %p239 = pneg %p146
        %p240 = pneg %p143
        %p241 = pneg %p172
        %p242 = pneg %p169
        %s243 = sand.u32 %s159, 1
        %s244 = scalar_lea.sflag [#allocation3], %s243
        %s245 = sand.u32 %s159, 1
        %s246 = scalar_lea.vmem [#allocation2], %s245
        %s247 = smul.u32 2, %s20
        %p248 = scmp.lt.s32.totalorder %s247, 3
        %s249 = scalar_select %p248, %s247, 3
        %s250 = smul.addr %s249, 3
        %s251 = smul.addr %s250, 8
        %s252 = scalar_lea.vmem %s0, %s251
        %s253 = smul.u32 2, %s20
        %v254 = vld [vmem:[%s252] sm:$0xff]
        %v255 = vld [vmem:[%s252 + $0x8] sm:$0xff]
        %v256 = vld [vmem:[%s252 + $0x10] sm:$0xff]
        %v257 = vld [vmem:[%s252 + $0x18] sm:$0xff]
        %v258 = vld [vmem:[%s252 + $0x20] sm:$0xff]
        %v259 = vld [vmem:[%s252 + $0x28] sm:$0xff]
        %v260 = vld [vmem:[%s1] sm:$0xff]
        %v261 = vld [vmem:[%s1 + $0x8] sm:$0xff]
        %v262 = vld [vmem:[%s1 + $0x10] sm:$0xff]
        %v263 = vld [vmem:[%s1 + $0x18] sm:$0xff]
        %v264 = vld [vmem:[%s1 + $0x20] sm:$0xff]
        %v265 = vld [vmem:[%s1 + $0x28] sm:$0xff]
        %v266 = vld [vmem:[%s1 + $0x30] sm:$0xff]
        %v267 = vld [vmem:[%s1 + $0x38] sm:$0xff]
        %v268 = vld [vmem:[%s1 + $0x40] sm:$0xff]
        %v269 = vld [vmem:[%s1 + $0x48] sm:$0xff]
        %v270 = vld [vmem:[%s1 + $0x50] sm:$0xff]
        %v271 = vld [vmem:[%s1 + $0x58] sm:$0xff]
        %v272 = vld [vmem:[%s1 + $0x60] sm:$0xff]
        %v273 = vld [vmem:[%s1 + $0x68] sm:$0xff]
        %v274 = vld [vmem:[%s1 + $0x70] sm:$0xff]
        %v275 = vld [vmem:[%s1 + $0x78] sm:$0xff]
        %v276 = vld [vmem:[%s1 + $0x80] sm:$0xff]
        %v277 = vld [vmem:[%s1 + $0x88] sm:$0xff]
        %v278 = vld [vmem:[%s1 + $0x90] sm:$0xff]
        %v279 = vld [vmem:[%s1 + $0x98] sm:$0xff]
        %v280 = vld [vmem:[%s1 + $0xa0] sm:$0xff]
        %v281 = vld [vmem:[%s1 + $0xa8] sm:$0xff]
        %v282 = vld [vmem:[%s1 + $0xb0] sm:$0xff]
        %v283 = vld [vmem:[%s1 + $0xb8] sm:$0xff]
        %v284 = vld [vmem:[%s1 + $0xc0] sm:$0xff]
        %v285 = vld [vmem:[%s1 + $0xc8] sm:$0xff]
        %v286 = vld [vmem:[%s1 + $0xd0] sm:$0xff]
        %v287 = vld [vmem:[%s1 + $0xd8] sm:$0xff]
        %v288 = vld [vmem:[%s1 + $0xe0] sm:$0xff]
        %v289 = vld [vmem:[%s1 + $0xe8] sm:$0xff]
        %v290 = vld [vmem:[%s1 + $0xf0] sm:$0xff]
        %v291 = vld [vmem:[%s1 + $0xf8] sm:$0xff]
        %v292 = vld [vmem:[%s1 + $0x100] sm:$0xff]
        %v293 = vld [vmem:[%s1 + $0x108] sm:$0xff]
        %v294 = vld [vmem:[%s1 + $0x110] sm:$0xff]
        %v295 = vld [vmem:[%s1 + $0x118] sm:$0xff]
        %v296 = vld [vmem:[%s1 + $0x120] sm:$0xff]
        %v297 = vld [vmem:[%s1 + $0x128] sm:$0xff]
        %v298 = vld [vmem:[%s1 + $0x130] sm:$0xff]
        %v299 = vld [vmem:[%s1 + $0x138] sm:$0xff]
        %v300 = vld [vmem:[%s2] sm:$0x1]
        %v302 = vlaneseq
        %v303 = vshrl.u32 %v302, 7
        %v304 = vsub.s32 0, %v303
        %v305 = vrot.slane %v300, %v304
        %vm307 = vcmask 523264
        %v309 = vsel %vm307, %v256, 0
        %v312 = vsel %vm307, %v259, 0
        %314 = vmatprep.subr.mxu0 0.0
        %315 = vmatpush1.msra.mxu0 %v260
        %316 = vmatprep.subr.mxu0 0.0
        %317 = vmatpush1.msra.mxu0 %v261
        %318 = vmatprep.subr.mxu0 0.0
        %319 = vmatpush1.msra.mxu0 %v262
        %320 = vmatprep.subr.mxu0 0.0
        %321 = vmatpush1.msra.mxu0 %v263
        %322 = vmatprep.subr.mxu0 0.0
        %323 = vmatpush1.msra.mxu0 %v264
        %324 = vmatprep.subr.mxu0 0.0
        %325 = vmatpush1.msra.mxu0 %v265
        %326 = vmatprep.subr.mxu0 0.0
        %327 = vmatpush1.msra.mxu0 %v266
        %328 = vmatprep.subr.mxu0 0.0
        %329 = vmatpush1.msra.mxu0 %v267
        %330 = vmatprep.subr.mxu0 0.0
        %331 = vmatpush1.msra.mxu0 %v268
        %332 = vmatprep.subr.mxu0 0.0
        %333 = vmatpush1.msra.mxu0 %v269
        %334 = vmatprep.subr.mxu0 0.0
        %335 = vmatpush1.msra.mxu0 %v270
        %336 = vmatprep.subr.mxu0 0.0
        %337 = vmatpush1.msra.mxu0 %v271
        %338 = vmatprep.subr.mxu0 0.0
        %339 = vmatpush1.msra.mxu0 %v272
        %340 = vmatprep.subr.mxu0 0.0
        %341 = vmatpush1.msra.mxu0 %v273
        %342 = vmatprep.subr.mxu0 0.0
        %343 = vmatpush1.msra.mxu0 %v274
        %344 = vmatprep.subr.mxu0 0.0
        %345 = vmatpush1.msra.mxu0 %v275
        %346 = vmatprep.subr.mxu0 0.0
        %347 = vmatpush1.msra.mxu0 %v276
        %348 = vmatprep.subr.mxu0 0.0
        %349 = vmatpush1.msra.mxu0 %v277
        %350 = vmatprep.subr.mxu0 0.0
        %351 = vmatpush1.msra.mxu0 %v278
        %352 = vmatprep.subr.mxu0 0.0
        %353 = vmatpush1.msra.mxu0 %v279
        %354 = vmatprep.subr.mxu0 0.0
        %355 = vmatpush1.msra.mxu0 %v280
        %356 = vmatprep.subr.mxu0 0.0
        %357 = vmatpush1.msra.mxu0 %v281
        %358 = vmatprep.subr.mxu0 0.0
        %359 = vmatpush1.msra.mxu0 %v282
        %360 = vmatprep.subr.mxu0 0.0
        %361 = vmatpush1.msra.mxu0 %v283
        %362 = vmatprep.subr.mxu0 0.0
        %363 = vmatpush1.msra.mxu0 %v284
        %364 = vmatprep.subr.mxu0 0.0
        %365 = vmatpush1.msra.mxu0 %v285
        %366 = vmatprep.subr.mxu0 0.0
        %367 = vmatpush1.msra.mxu0 %v286
        %368 = vmatprep.subr.mxu0 0.0
        %369 = vmatpush1.msra.mxu0 %v287
        %370 = vmatprep.subr.mxu0 0.0
        %371 = vmatpush1.msra.mxu0 %v288
        %372 = vmatprep.subr.mxu0 0.0
        %373 = vmatpush1.msra.mxu0 %v289
        %374 = vmatprep.subr.mxu0 0.0
        %375 = vmatpush1.msra.mxu0 %v290
        %376 = vmatprep.subr.mxu0 0.0
        %377 = vmatpush1.msra.mxu0 %v291
        %378 = vmatprep.mubr.f32.mxu0 %v255
        %379 = vmatmul.mubr.f32.gmra.mrb[0].mxu0 %v254
        %v380 = vpop.f32.mrb[0].mxu0
        %v381 = vadd.f32 %v305, %v380
        %v382 = vpop.f32.mrb[0].mxu0
        %383 = vmatprep.mubr.f32.mxu0 %v258
        %384 = vmatmul.mubr.f32.gmra.mrb[0].mxu0 %v257
        %v385 = vpop.f32.mrb[0].mxu0
        %v386 = vadd.f32 %v305, %v385
        %v387 = vpop.f32.mrb[0].mxu0
        %388 = vdwg.mxu0
        %389 = vmatprep.subr.mxu0 0.0
        %390 = vmatpush1.msra.mxu0 %v292
        %391 = vmatprep.subr.mxu0 0.0
        %392 = vmatpush1.msra.mxu0 %v293
        %393 = vmatprep.subr.mxu0 0.0
        %394 = vmatpush1.msra.mxu0 %v294
        %395 = vmatprep.subr.mxu0 0.0
        %396 = vmatpush1.msra.mxu0 %v295
        %397 = vmatprep.subr.mxu0 0.0
        %398 = vmatpush1.msra.mxu0 %v296
        %399 = vmatprep.subr.mxu0 0.0
        %400 = vmatpush1.msra.mxu0 %v297
        %401 = vmatprep.subr.mxu0 0.0
        %402 = vmatpush1.msra.mxu0 %v298
        %403 = vmatprep.subr.mxu0 0.0
        %404 = vmatpush1.msra.mxu0 %v299
        %405 = vmatprep.subr.mxu0 0.0
        %406 = vmatpush1.msra.mxu0 0.0
        %407 = vmatprep.subr.mxu0 0.0
        %408 = vmatpush1.msra.mxu0 0.0
        %409 = vmatprep.subr.mxu0 0.0
        %410 = vmatpush1.msra.mxu0 0.0
        %411 = vmatprep.subr.mxu0 0.0
        %412 = vmatpush1.msra.mxu0 0.0
        %413 = vmatprep.subr.mxu0 0.0
        %414 = vmatpush1.msra.mxu0 0.0
        %415 = vmatprep.subr.mxu0 0.0
        %416 = vmatpush1.msra.mxu0 0.0
        %417 = vmatprep.subr.mxu0 0.0
        %418 = vmatpush1.msra.mxu0 0.0
        %419 = vmatprep.subr.mxu0 0.0
        %420 = vmatpush1.msra.mxu0 0.0
        %421 = vmatprep.subr.mxu0 0.0
        %422 = vmatpush1.msra.mxu0 0.0
        %423 = vmatprep.subr.mxu0 0.0
        %424 = vmatpush1.msra.mxu0 0.0
        %425 = vmatprep.subr.mxu0 0.0
        %426 = vmatpush1.msra.mxu0 0.0
        %427 = vmatprep.subr.mxu0 0.0
        %428 = vmatpush1.msra.mxu0 0.0
        %429 = vmatprep.subr.mxu0 0.0
        %430 = vmatpush1.msra.mxu0 0.0
        %431 = vmatprep.subr.mxu0 0.0
        %432 = vmatpush1.msra.mxu0 0.0
        %433 = vmatprep.subr.mxu0 0.0
        %434 = vmatpush1.msra.mxu0 0.0
        %435 = vmatprep.subr.mxu0 0.0
        %436 = vmatpush1.msra.mxu0 0.0
        %437 = vmatprep.subr.mxu0 0.0
        %438 = vmatpush1.msra.mxu0 0.0
        %439 = vmatprep.subr.mxu0 0.0
        %440 = vmatpush1.msra.mxu0 0.0
        %441 = vmatprep.subr.mxu0 0.0
        %442 = vmatpush1.msra.mxu0 0.0
        %443 = vmatprep.subr.mxu0 0.0
        %444 = vmatpush1.msra.mxu0 0.0
        %445 = vmatprep.subr.mxu0 0.0
        %446 = vmatpush1.msra.mxu0 0.0
        %447 = vmatprep.subr.mxu0 0.0
        %448 = vmatpush1.msra.mxu0 0.0
        %449 = vmatprep.subr.mxu0 0.0
        %450 = vmatpush1.msra.mxu0 0.0
        %451 = vmatprep.subr.mxu0 0.0
        %452 = vmatpush1.msra.mxu0 0.0
        %453 = vmatprep.mubr.f32.mxu0 0.0
        %454 = vmatmul.mubr.f32.gmra.mrb[0].mxu0 %v309
        %v455 = vpop.f32.mrb[0].mxu0
        %v456 = vadd.f32 %v381, %v455
        %v457 = vpop.f32.mrb[0].mxu0
        %458 = vmatprep.mubr.f32.mxu0 0.0
        %459 = vmatmul.mubr.f32.gmra.mrb[0].mxu0 %v312
        %v460 = vpop.f32.mrb[0].mxu0
        %v461 = vadd.f32 %v386, %v460
        %v462 = vpop.f32.mrb[0].mxu0
        %463 = vdwg.mxu0
        %v464 = vmax.f32 %v456, 0.0
        %v465 = vmax.f32 %v461, 0.0
        %v466 = vld [vmem:[%s3] sm:$0xff]
        %v467 = vld [vmem:[%s3 + $0x8] sm:$0xff]
        %v468 = vadd.f32 %v464, %v466
        %v469 = vadd.f32 %v465, %v467
        %vm470 = vcmask 195584
        %v471 = vsel %vm470, %v468, -inf
        %v472 = vsel %vm470, %v469, -inf
        %v473 = vmax.f32 %v471, %v472
        %v474 = vrot.slane %v473, 4
        %v475 = vmax.f32 %v473, %v474
        %v476 = vrot.slane %v475, 2
        %v477 = vmax.f32 %v475, %v476
        %v478 = vrot.slane %v477, 1
        %v479 = vmax.f32 %v477, %v478
        %v480 = vld [vmem:[%s4] sm:$0xff]
        %v481 = vld [vmem:[%s4 + $0x8] sm:$0xff]
        %v482 = vld [vmem:[%s4 + $0x10] sm:$0xff]
        %v483 = vld [vmem:[%s5] sm:$0x1]
        %v485 = vsel %vm470, %v479, 0
        %487 = vmatprep.subr.mxu0 0.0
        %488 = vmatpush1.msra.mxu0 %v480
        %489 = vmatprep.subr.mxu0 0.0
        %490 = vmatpush1.msra.mxu0 %v481
        %491 = vmatprep.subr.mxu0 0.0
        %492 = vmatpush1.msra.mxu0 %v482
        %493 = vmatprep.subr.mxu0 0.0
        %494 = vmatpush1.msra.mxu0 0.0
        %495 = vmatprep.subr.mxu0 0.0
        %496 = vmatpush1.msra.mxu0 0.0
        %497 = vmatprep.subr.mxu0 0.0
        %498 = vmatpush1.msra.mxu0 0.0
        %499 = vmatprep.subr.mxu0 0.0
        %500 = vmatpush1.msra.mxu0 0.0
        %501 = vmatprep.subr.mxu0 0.0
        %502 = vmatpush1.msra.mxu0 0.0
        %503 = vmatprep.subr.mxu0 0.0
        %504 = vmatpush1.msra.mxu0 0.0
        %505 = vmatprep.subr.mxu0 0.0
        %506 = vmatpush1.msra.mxu0 0.0
        %507 = vmatprep.subr.mxu0 0.0
        %508 = vmatpush1.msra.mxu0 0.0
        %509 = vmatprep.subr.mxu0 0.0
        %510 = vmatpush1.msra.mxu0 0.0
        %511 = vmatprep.subr.mxu0 0.0
        %512 = vmatpush1.msra.mxu0 0.0
        %513 = vmatprep.subr.mxu0 0.0
        %514 = vmatpush1.msra.mxu0 0.0
        %515 = vmatprep.subr.mxu0 0.0
        %516 = vmatpush1.msra.mxu0 0.0
        %517 = vmatprep.subr.mxu0 0.0
        %518 = vmatpush1.msra.mxu0 0.0
        %519 = vmatprep.subr.mxu0 0.0
        %520 = vmatpush1.msra.mxu0 0.0
        %521 = vmatprep.subr.mxu0 0.0
        %522 = vmatpush1.msra.mxu0 0.0
        %523 = vmatprep.subr.mxu0 0.0
        %524 = vmatpush1.msra.mxu0 0.0
        %525 = vmatprep.subr.mxu0 0.0
        %526 = vmatpush1.msra.mxu0 0.0
        %527 = vmatprep.subr.mxu0 0.0
        %528 = vmatpush1.msra.mxu0 0.0
        %529 = vmatprep.subr.mxu0 0.0
        %530 = vmatpush1.msra.mxu0 0.0
        %531 = vmatprep.subr.mxu0 0.0
        %532 = vmatpush1.msra.mxu0 0.0
        %533 = vmatprep.subr.mxu0 0.0
        %534 = vmatpush1.msra.mxu0 0.0
        %535 = vmatprep.subr.mxu0 0.0
        %536 = vmatpush1.msra.mxu0 0.0
        %537 = vmatprep.subr.mxu0 0.0
        %538 = vmatpush1.msra.mxu0 0.0
        %539 = vmatprep.subr.mxu0 0.0
        %540 = vmatpush1.msra.mxu0 0.0
        %541 = vmatprep.subr.mxu0 0.0
        %542 = vmatpush1.msra.mxu0 0.0
        %543 = vmatprep.subr.mxu0 0.0
        %544 = vmatpush1.msra.mxu0 0.0
        %545 = vmatprep.subr.mxu0 0.0
        %546 = vmatpush1.msra.mxu0 0.0
        %547 = vmatprep.subr.mxu0 0.0
        %548 = vmatpush1.msra.mxu0 0.0
        %549 = vmatprep.subr.mxu0 0.0
        %550 = vmatpush1.msra.mxu0 0.0
        %551 = vmatprep.mubr.f32.mxu0 0.0
        %552 = vmatmul.mubr.f32.gmra.mrb[0].mxu0 %v485
        %v553 = vpop.f32.mrb[0].mxu0
        %v554 = vadd.f32 %v483, %v553
        %v555 = vpop.f32.mrb[0].mxu0
        %556 = vdwg.mxu0
        %vm557 = vcmask 24576
        %v558 = vsel %vm557, %v554, -inf
        %559 = vmax.xlane.f32.xlu0 %v558
        %v560 = vpop.xlane.xlu0 %559
        %v561 = vsub.f32 %v554, %v560
        %v562 = vmul.f32 %v561, 1.442695
        %v563 = vpow.pop %v562
        %v564 = vsel %vm557, %v563, 0.0
        %565 = vadd.xlane.f32.xlu0 %v564
        %v566 = vpop.xlane.xlu0 %565
        %v567 = vlog2.pop %v566
        %v568 = vmul.f32 %v567, 0.6931472
        %v569 = vsub.f32 %v561, %v568
        %570 = vst.msk [vmem:[%s246] sm:$0x1] %vm557, %v569
        %s571 = sand.u32 %s159, 1
        %s572 = scalar_lea.sflag [#allocation3], %s571
        %s573 = sand.u32 %s159, 1
        %s574 = scalar_lea.vmem [#allocation2], %s573
        // Predicated region
        $region45: #{_lambda_.1} parent=43 // pred_check
          %p575 = pneg %p169
        $region46: #{_lambda_.1} parent=43 // pred_check_branch
          %577 = sbr.rel (%p575) target = $region48
        $region47: #{_lambda_.1} parent=43 // pred_region
          %s579 = ssub.s32 16, 16
          %580 = vsyncadd %s572, %s579
          %s581 = smul.addr %s20, 16
          %s582 = scalar_lea.hbm %s6, %s581
          %s584 = sshll.u32 %s574, 4
          %s585 = int_to_ptr.vmem [resolvable:$true] %s584
          %587 = dma.vmem_to_hbm [thread:$0]  %s585, 16, %s582, %s572
        $region48: #{_lambda_.1} parent=43 // pred_fallthru
          _
      $region44: #{_lambda_.1} parent=5 // pred_fallthru
        _
      %p588 = scmp.le.s32.totalorder 2, %s15
      // Predicated region
      $region49: #{_lambda_.1} parent=5 // pred_check
        %p589 = pneg %p588
      $region50: #{_lambda_.1} parent=5 // pred_check_branch
        %591 = sbr.rel (%p589) target = $region52
      $region51: #{_lambda_.1} parent=5 // pred_region
        %s592 = ssub.s32 %s15, 2
        // Predicated region
        $region53: #{_lambda_.1} parent=51 // pred_check
          %p593 = pneg %p175
        $region54: #{_lambda_.1} parent=51 // pred_check_branch
          %595 = sbr.rel (%p593) target = $region56
        $region55: #{_lambda_.1} parent=51 // pred_region
          %s596 = sand.u32 %s160, 1
          %s597 = scalar_lea.sflag [#allocation3], %s596
          %s598 = sand.u32 %s160, 1
          %s599 = scalar_lea.vmem [#allocation2], %s598
          %600 = dma.done %s597, 16
        $region56: #{_lambda_.1} parent=51 // pred_fallthru
          _
      $region52: #{_lambda_.1} parent=5 // pred_fallthru
        _
    $region6: #{_lambda_.1} parent=1 // loop_footer
      %s19 = sadd.s32 1, %s15
    $region7: #{_lambda_.1} parent=1 // loop_footer_branch
      %14 = sbr.rel target = $region3
    $region8: #{_lambda_.1} parent=1 // loop_exit
      _
    %601 = vsyncpa [#allocation3], 1
    %s602 = scalar_lea.sflag [#allocation3], 1
    %603 = vsyncpa %s602, 1

</llo_original>
